<compile_context>
chip_gen: v7x
topology: tpu7x:2x2x1
jax: 0.10.0
libtpu: 0.0.40
codegen_flags: <defaults>
</compile_context>

<pallas_src>
import functools

import jax
import jax.numpy as jnp
from jax.experimental import pallas as pl
from jax.experimental.pallas import tpu as pltpu


def _proj_hypercube_kernel(h_ref, o_ref, *, use_mxu_rowsum):
    h = h_ref[...]                      # (tm, h_dim) f32 uniform samples
    h_dim = h.shape[-1]

    if use_mxu_rowsum:
        # ones-matmul: every output lane holds the row sum -> broadcast free.
        ones_m = jnp.ones((h_dim, h_dim), jnp.float32)

        def row_sum(x):
            return jnp.dot(x, ones_m,
                           preferred_element_type=jnp.float32,
                           precision=jax.lax.Precision.HIGHEST)
    else:
        def row_sum(x):
            return jnp.sum(x, axis=-1, keepdims=True)

    # F.normalize(p=2, dim=1): h / max(||h||_2, 1e-12)
    #   == h * rsqrt(max(sum(h^2), 1e-24))     (EUP rsqrt, no per-elem divide)
    inv_norm = jax.lax.rsqrt(jnp.maximum(row_sum(h * h), jnp.float32(1e-24)))
    hn = h * inv_norm

    # softmax(dim=1); elements are in [-1, 1] after normalization, so the
    # usual max-subtraction is unnecessary for overflow safety.
    e = jnp.exp(hn)
    denom = row_sum(e)
    o_ref[...] = (e / denom).astype(o_ref.dtype)


def projected_hypercube_sampling(key, sample_size, h_dim, h_dist_lim, *,
                                 tm=8192, out_dtype=jnp.float32):
    """Uniform(-h_dist_lim, h_dist_lim) logits, row-L2-normalized + softmaxed.

    `out_dtype=jnp.bfloat16` halves the HBM write bytes (compute stays f32)
    if downstream consumers accept it; default matches torch (f32).
    """
    # Uniform draw (XLA) -- the kernel consumes this stream.
    h_logits = jax.random.uniform(
        key, (sample_size, h_dim), jnp.float32,
        minval=-h_dist_lim, maxval=h_dist_lim)

    # --- tile-size selection -----------------------------------------------
    # Live VMEM ~= (input + output) double-buffered + ~2-3 compiler-
    # materialized intermediates ~= 8 blocks.  Budget ~24 MiB of the 32 MiB
    # scoped limit requested below (v7x only has 64 MiB physical VMEM).
    bytes_per_row = h_dim * jnp.dtype(jnp.float32).itemsize
    max_tm = max(8, ((24 << 20) // (8 * bytes_per_row)) // 8 * 8)
    tm = min(tm, max_tm)
    # Keep >= 2 grid steps whenever possible: v7x has 2 TensorCores per chip,
    # and a single-step grid also forfeits any DMA/compute overlap.
    tm = min(tm, max(8, pl.cdiv(pl.cdiv(sample_size, 2), 8) * 8))
    tm = max(8, tm)

    grid = (pl.cdiv(sample_size, tm),)

    # NOTE: block last dim == h_dim == full array dim, so any h_dim is legal;
    # for best store bandwidth h_dim should be a multiple of 128 (lane-dense).
    kernel = functools.partial(_proj_hypercube_kernel,
                               use_mxu_rowsum=(h_dim <= 512))

    return pl.pallas_call(
        kernel,
        out_shape=jax.ShapeDtypeStruct((sample_size, h_dim), out_dtype),
        grid=grid,
        in_specs=[pl.BlockSpec((tm, h_dim), lambda i: (i, 0))],
        out_specs=pl.BlockSpec((tm, h_dim), lambda i: (i, 0)),
        compiler_params=pltpu.CompilerParams(
            dimension_semantics=("parallel",),
            vmem_limit_bytes=32 * 1024 * 1024),
    )(h_logits)


if __name__ == "__main__":
    def _reference(key, sample_size, h_dim, h_dist_lim):
        h = jax.random.uniform(key, (sample_size, h_dim), jnp.float32,
                               minval=-h_dist_lim, maxval=h_dist_lim)
        norm = jnp.maximum(
            jnp.sqrt(jnp.sum(h * h, axis=1, keepdims=True)), 1e-12)
        return jax.nn.softmax(h / norm, axis=1)

    h_dim = 128
    h_dist_lim = 1.0

    # Small shape consistent with the module's forward signature.
    key = jax.random.PRNGKey(0)
    sample_size = 16
    out = projected_hypercube_sampling(key, sample_size, h_dim, h_dist_lim)
    out = jax.block_until_ready(out)
    ref = _reference(key, sample_size, h_dim, h_dist_lim)

    assert out.shape == (sample_size, h_dim)
    assert bool(jnp.all(jnp.isfinite(out)))
    assert bool(jnp.all(out > 0.0))
    assert bool(jnp.allclose(jnp.sum(out, axis=1), 1.0, atol=1e-5))
    assert bool(jnp.allclose(out, ref, atol=1e-5, rtol=1e-4))

    # Non-multiple-of-8 row count: exercises the masked partial last block and
    # a multi-step ("parallel") grid.
    key2 = jax.random.PRNGKey(1)
    sample_size2 = 100
    out2 = projected_hypercube_sampling(key2, sample_size2, h_dim, h_dist_lim)
    out2 = jax.block_until_ready(out2)
    ref2 = _reference(key2, sample_size2, h_dim, h_dist_lim)
    assert out2.shape == (sample_size2, h_dim)
    assert bool(jnp.all(jnp.isfinite(out2)))
    assert bool(jnp.allclose(jnp.sum(out2, axis=1), 1.0, atol=1e-5))
    assert bool(jnp.allclose(out2, ref2, atol=1e-5, rtol=1e-4))

    print("KERNEL_OK")
</pallas_src>

<mosaic_0001>
module attributes {stable_mosaic.version = 11 : i64} {
  func.func @_proj_hypercube_kernel(%arg0: i32, %arg1: memref<8x128xf32, #tpu.memory_space<vmem>>, %arg2: memref<8x128xf32, #tpu.memory_space<vmem>>) attributes {dimension_semantics = [#tpu.dimension_semantics<parallel>], iteration_bounds = array<i64: 2>, scalar_prefetch = 0 : i64, scratch_operands = 0 : i64, tpu.core_type = #tpu.core_type<tc>, window_params = [{transform_indices = @transform_0, window_bounds = array<i64: 8, 128>}, {transform_indices = @transform_1, window_bounds = array<i64: 8, 128>}]} {
    %c0 = arith.constant 0 : index
    %c0_0 = arith.constant 0 : index
    %0 = vector.load %arg1[%c0, %c0_0] : memref<8x128xf32, #tpu.memory_space<vmem>>, vector<8x128xf32>
    %cst = arith.constant 1.000000e+00 : f32
    %1 = vector.broadcast %cst : f32 to vector<128x128xf32>
    %2 = arith.mulf %0, %0 : vector<8x128xf32>
    %cst_1 = arith.constant dense<0.000000e+00> : vector<8x128xf32>
    %3 = tpu.matmul %2, %1, %cst_1 {dimension_numbers = #tpu.dot_dimension_numbers<[1], [0], [0], [1], [0, 0, 1, 1], [], []>, precision = #tpu.contract_precision<fp32>} : vector<8x128xf32>, vector<128x128xf32>, vector<8x128xf32> -> vector<8x128xf32>
    %cst_2 = arith.constant 1.000000e-24 : f32
    %4 = vector.broadcast %cst_2 : f32 to vector<8x128xf32>
    %5 = arith.maximumf %3, %4 : vector<8x128xf32>
    %6 = math.rsqrt %5 : vector<8x128xf32>
    %7 = arith.mulf %0, %6 : vector<8x128xf32>
    %8 = math.exp %7 : vector<8x128xf32>
    %cst_3 = arith.constant dense<0.000000e+00> : vector<8x128xf32>
    %9 = tpu.matmul %8, %1, %cst_3 {dimension_numbers = #tpu.dot_dimension_numbers<[1], [0], [0], [1], [0, 0, 1, 1], [], []>, precision = #tpu.contract_precision<fp32>} : vector<8x128xf32>, vector<128x128xf32>, vector<8x128xf32> -> vector<8x128xf32>
    %10 = arith.divf %8, %9 : vector<8x128xf32>
    %c0_4 = arith.constant 0 : index
    %c0_5 = arith.constant 0 : index
    %11 = vector.load %arg2[%c0_4, %c0_5] : memref<8x128xf32, #tpu.memory_space<vmem>>, vector<8x128xf32>
    tpu.vector_store %arg2[%c0_4, %c0_5], %10 {strides = array<i32>} : memref<8x128xf32, #tpu.memory_space<vmem>>, vector<8x128xf32>,
    return
  }
  func.func @transform_0(%arg0: i32) -> (i32, i32) {
    %c0_i32 = arith.constant 0 : i32
    %c0_i32_0 = arith.constant 0 : i32
    return %arg0, %c0_i32 : i32, i32
  }
  func.func @transform_1(%arg0: i32) -> (i32, i32) {
    %c0_i32 = arith.constant 0 : i32
    %c0_i32_0 = arith.constant 0 : i32
    return %arg0, %c0_i32 : i32, i32
  }
}

</mosaic_0001>

<llo_original>
// kernel: tpu_custom_call.1
$region0: #{tpu_custom_call.1}
  #allocation0 [shape = 'u32[]', space=smem, size = 0x4, offset = 0x4, fixed_abs, tag = 'smem constant byte address 0x4 - core index']
  #allocation1 [shape = 'u32[144,128]{1,0:T(1,128)}', space=vmem, size = 0x12000, scoped, tag = 'internal scratch']
  %s0 = inlined_call_operand.hbm [shape: f32[16,128], index: 0, kind: input, shape index: {}]
  %s1 = inlined_call_operand.hbm [shape: f32[16,128], index: 1, kind: output, shape index: {}]
  %s2 = sld [smem:[#allocation0]]
  $region41: #{tpu_custom_call.1} parent=0
    _
  %s4 = ssub.s32 1, %s2
  %s5 = scalar_select 0, %s4, %s2
  $region1: #{tpu_custom_call.1} parent=0
    #allocation2 [shape = 'u8[8192]{0}', space=vmem, size = 0x2000, scoped, tag = 'input window, operand 0']
    #allocation3 [shape = 's32[2]{0}', space=sflag, size = 0x8, scoped, tag = 'scoped memory for tpu_custom_call.1']
    #allocation4 [shape = 's32[2]{0}', space=sflag, size = 0x8, scoped, tag = 'scoped memory for tpu_custom_call.1']
    #allocation5 [shape = 'u8[8192]{0}', space=vmem, size = 0x2000, scoped, tag = 'output window, operand 0']
    %6 = vsyncpa [#allocation3], 0
    %s7 = scalar_lea.sflag [#allocation3], 1
    %8 = vsyncpa %s7, 0
    %9 = vsyncpa [#allocation4], 0
    %s10 = scalar_lea.sflag [#allocation4], 1
    %11 = vsyncpa %s10, 0
    loop: start=0, step=1, limit=4
    $region2: #{tpu_custom_call.1} parent=1 // loop_pre_header
      _
    $region3: #{tpu_custom_call.1} parent=1 // loop_header
      %s13 = sphi 0, %s17
      %p14 = scmp.ge.s32.totalorder %s13, 4
      %s23 = sphi 0, %s25
      %s26 = sphi 0, %s23
      %s27 = sphi 0, %s26
      %s43 = sphi 0, %s27
      %s49 = sphi 0, %s51
      %s52 = sphi 0, %s49
      %s53 = sphi 0, %s52
      %s69 = sphi 0, %s53
    $region4: #{tpu_custom_call.1} parent=1 // loop_header_branch
      %16 = sbr.rel (%p14) target = $region8
    $region5: #{tpu_custom_call.1} parent=1 // loop_body
      %s18 = ssub.s32 %s13, 1
      %s19 = ssub.s32 %s13, 2
      %s20 = sadd.s32 %s13, 1
      %s21 = ssub.s32 %s13, %s20
      %p22 = scmp.eq.s32.totalorder %s21, 0
      %s24 = sadd.s32 %s23, 1
      %s25 = scalar_select %p22, %s23, %s24
      %p28 = pneg %p22
      %p29 = scmp.eq.s32.totalorder %s13, 1
      %p30 = por %p28, %p29
      %p31 = scmp.ne.s32.totalorder %s23, %s26
      %p32 = scmp.eq.s32.totalorder %s13, 0
      %p33 = por %p31, %p32
      %p34 = scmp.ne.s32.totalorder %s23, %s26
      %p35 = scmp.eq.s32.totalorder %s18, 1
      %p36 = por %p34, %p35
      %p37 = scmp.ne.s32.totalorder %s26, %s27
      %p38 = scmp.eq.s32.totalorder %s18, 0
      %p39 = por %p37, %p38
      %p40 = scmp.ne.s32.totalorder %s26, %s27
      %p41 = scmp.eq.s32.totalorder %s19, 1
      %p42 = por %p40, %p41
      %p44 = scmp.ne.s32.totalorder %s27, %s43
      %p45 = scmp.eq.s32.totalorder %s19, 0
      %p46 = por %p44, %p45
      %s47 = ssub.s32 %s13, %s20
      %p48 = scmp.eq.s32.totalorder %s47, 0
      %s50 = sadd.s32 %s49, 1
      %s51 = scalar_select %p48, %s49, %s50
      %p54 = pneg %p48
      %p55 = scmp.eq.s32.totalorder %s13, 1
      %p56 = por %p54, %p55
      %p57 = scmp.ne.s32.totalorder %s49, %s52
      %p58 = scmp.eq.s32.totalorder %s13, 0
      %p59 = por %p57, %p58
      %p60 = scmp.ne.s32.totalorder %s49, %s52
      %p61 = scmp.eq.s32.totalorder %s18, 1
      %p62 = por %p60, %p61
      %p63 = scmp.ne.s32.totalorder %s52, %s53
      %p64 = scmp.eq.s32.totalorder %s18, 0
      %p65 = por %p63, %p64
      %p66 = scmp.ne.s32.totalorder %s52, %s53
      %p67 = scmp.eq.s32.totalorder %s19, 1
      %p68 = por %p66, %p67
      %p70 = scmp.ne.s32.totalorder %s53, %s69
      %p71 = scmp.eq.s32.totalorder %s19, 0
      %p72 = por %p70, %p71
      %p73 = scmp.le.s32.totalorder 1, %s13
      %p74 = scmp.lt.s32.totalorder %s13, 3
      %p75 = pnand %p73, %p74
      %p76 = pneg %p75
      // Predicated region
      $region9: #{tpu_custom_call.1} parent=5 // pred_check
        _
      $region10: #{tpu_custom_call.1} parent=5 // pred_check_branch
        %78 = sbr.rel (%p75) target = $region12
      $region11: #{tpu_custom_call.1} parent=5 // pred_region
        %s79 = ssub.s32 %s13, 1
      $region12: #{tpu_custom_call.1} parent=5 // pred_fallthru
        _
      %p80 = scmp.lt.s32.totalorder %s13, 2
      // Predicated region
      $region13: #{tpu_custom_call.1} parent=5 // pred_check
        %p81 = pneg %p80
      $region14: #{tpu_custom_call.1} parent=5 // pred_check_branch
        %83 = sbr.rel (%p81) target = $region16
      $region15: #{tpu_custom_call.1} parent=5 // pred_region
        // Predicated region
        $region17: #{tpu_custom_call.1} parent=15 // pred_check
          %p84 = pneg %p33
        $region18: #{tpu_custom_call.1} parent=15 // pred_check_branch
          %86 = sbr.rel (%p84) target = $region20
        $region19: #{tpu_custom_call.1} parent=15 // pred_region
          %s87 = sand.u32 %s23, 1
          %s88 = scalar_lea.sflag [#allocation3], %s87
          %s89 = sand.u32 %s23, 1
          %s90 = smul.addr %s89, 8
          %s91 = scalar_lea.vmem [#allocation2], %s90
          %s93 = ssub.s32 128, 128
          %94 = vsyncadd %s88, %s93
          %s95 = smul.addr %s13, 128
          %s96 = scalar_lea.hbm %s0, %s95
          %s98 = sshll.u32 %s91, 4
          %s99 = int_to_ptr.vmem [resolvable:$true] %s98
          %101 = dma.hbm_to_vmem [thread:$0]  %s96, 128, %s99, %s88
        $region20: #{tpu_custom_call.1} parent=15 // pred_fallthru
          _
      $region16: #{tpu_custom_call.1} parent=5 // pred_fallthru
        _
      %p102 = scmp.le.s32.totalorder 1, %s13
      %p103 = scmp.lt.s32.totalorder %s13, 3
      %p104 = pnand %p102, %p103
      %p105 = pneg %p104
      // Predicated region
      $region21: #{tpu_custom_call.1} parent=5 // pred_check
        _
      $region22: #{tpu_custom_call.1} parent=5 // pred_check_branch
        %107 = sbr.rel (%p104) target = $region24
      $region23: #{tpu_custom_call.1} parent=5 // pred_region
        %s108 = ssub.s32 %s13, 1
        %s109 = sand.u32 %s26, 1
        %s110 = scalar_lea.sflag [#allocation3], %s109
        %s111 = sand.u32 %s26, 1
        %s112 = smul.addr %s111, 8
        %s113 = scalar_lea.vmem [#allocation2], %s112
        // Predicated region
        $region25: #{tpu_custom_call.1} parent=23 // pred_check
          %p114 = pneg %p39
        $region26: #{tpu_custom_call.1} parent=23 // pred_check_branch
          %116 = sbr.rel (%p114) target = $region28
        $region27: #{tpu_custom_call.1} parent=23 // pred_region
          %117 = dma.done %s110, 128
        $region28: #{tpu_custom_call.1} parent=23 // pred_fallthru
          _
        %s118 = sand.u32 %s26, 1
        %s119 = scalar_lea.sflag [#allocation3], %s118
        %s120 = sand.u32 %s26, 1
        %s121 = smul.addr %s120, 8
        %s122 = scalar_lea.vmem [#allocation2], %s121
        %p123 = pneg %p39
        %p124 = pneg %p36
        %p125 = pneg %p65
        %p126 = pneg %p62
        %s127 = sand.u32 %s52, 1
        %s128 = scalar_lea.sflag [#allocation4], %s127
        %s129 = sand.u32 %s52, 1
        %s130 = smul.addr %s129, 8
        %s131 = scalar_lea.vmem [#allocation5], %s130
        %v132 = vld [vmem:[%s113] sm:$0xff]
        %v133 = vmul.f32 %v132, %v132
        %134 = vmatprep.subr.mxu0 0.0
        %135 = vmatpush1.msra.mxu0 1.0
        %136 = vmatprep.subr.mxu0 0.0
        %137 = vmatpush1.msra.mxu0 1.0
        %138 = vmatprep.subr.mxu0 0.0
        %139 = vmatpush1.msra.mxu0 1.0
        %140 = vmatprep.subr.mxu0 0.0
        %141 = vmatpush1.msra.mxu0 1.0
        %142 = vmatprep.subr.mxu0 0.0
        %143 = vmatpush1.msra.mxu0 1.0
        %144 = vmatprep.subr.mxu0 0.0
        %145 = vmatpush1.msra.mxu0 1.0
        %146 = vmatprep.subr.mxu0 0.0
        %147 = vmatpush1.msra.mxu0 1.0
        %148 = vmatprep.subr.mxu0 0.0
        %149 = vmatpush1.msra.mxu0 1.0
        %150 = vmatprep.subr.mxu0 0.0
        %151 = vmatpush1.msra.mxu0 1.0
        %152 = vmatprep.subr.mxu0 0.0
        %153 = vmatpush1.msra.mxu0 1.0
        %154 = vmatprep.subr.mxu0 0.0
        %155 = vmatpush1.msra.mxu0 1.0
        %156 = vmatprep.subr.mxu0 0.0
        %157 = vmatpush1.msra.mxu0 1.0
        %158 = vmatprep.subr.mxu0 0.0
        %159 = vmatpush1.msra.mxu0 1.0
        %160 = vmatprep.subr.mxu0 0.0
        %161 = vmatpush1.msra.mxu0 1.0
        %162 = vmatprep.subr.mxu0 0.0
        %163 = vmatpush1.msra.mxu0 1.0
        %164 = vmatprep.subr.mxu0 0.0
        %165 = vmatpush1.msra.mxu0 1.0
        %166 = vmatprep.subr.mxu0 0.0
        %167 = vmatpush1.msra.mxu0 0.0
        %168 = vmatprep.subr.mxu0 0.0
        %169 = vmatpush1.msra.mxu0 0.0
        %170 = vmatprep.subr.mxu0 0.0
        %171 = vmatpush1.msra.mxu0 0.0
        %172 = vmatprep.subr.mxu0 0.0
        %173 = vmatpush1.msra.mxu0 0.0
        %174 = vmatprep.subr.mxu0 0.0
        %175 = vmatpush1.msra.mxu0 0.0
        %176 = vmatprep.subr.mxu0 0.0
        %177 = vmatpush1.msra.mxu0 0.0
        %178 = vmatprep.subr.mxu0 0.0
        %179 = vmatpush1.msra.mxu0 0.0
        %180 = vmatprep.subr.mxu0 0.0
        %181 = vmatpush1.msra.mxu0 0.0
        %182 = vmatprep.subr.mxu0 0.0
        %183 = vmatpush1.msra.mxu0 0.0
        %184 = vmatprep.subr.mxu0 0.0
        %185 = vmatpush1.msra.mxu0 0.0
        %186 = vmatprep.subr.mxu0 0.0
        %187 = vmatpush1.msra.mxu0 0.0
        %188 = vmatprep.subr.mxu0 0.0
        %189 = vmatpush1.msra.mxu0 0.0
        %190 = vmatprep.subr.mxu0 0.0
        %191 = vmatpush1.msra.mxu0 0.0
        %192 = vmatprep.subr.mxu0 0.0
        %193 = vmatpush1.msra.mxu0 0.0
        %194 = vmatprep.subr.mxu0 0.0
        %195 = vmatpush1.msra.mxu0 0.0
        %196 = vmatprep.subr.mxu0 0.0
        %197 = vmatpush1.msra.mxu0 0.0
        %198 = vmatprep.mubr.f32.mxu0 0.0
        %v199 = vand.u32 %v133, 4294901760
        %v200 = vsub.f32 %v133, %v199
        %v201 = vand.u32 %v200, 4294901760
        %v202 = vsub.f32 %v200, %v201
        %v203 = vand.u32 %v202, 4294901760
        %204 = vmatmul.mubr.f32.gmra.mrb[0].mxu0 %v203
        %v205 = vpop.f32.mrb[0].mxu0
        %v206 = vadd.f32 0.0, %v205
        %v207 = vpop.f32.mrb[0].mxu0
        %208 = vdwg.mxu0
        %209 = vmatprep.subr.mxu0 0.0
        %210 = vmatpush1.msra.mxu0 0.0
        %211 = vmatprep.subr.mxu0 0.0
        %212 = vmatpush1.msra.mxu0 0.0
        %213 = vmatprep.subr.mxu0 0.0
        %214 = vmatpush1.msra.mxu0 0.0
        %215 = vmatprep.subr.mxu0 0.0
        %216 = vmatpush1.msra.mxu0 0.0
        %217 = vmatprep.subr.mxu0 0.0
        %218 = vmatpush1.msra.mxu0 0.0
        %219 = vmatprep.subr.mxu0 0.0
        %220 = vmatpush1.msra.mxu0 0.0
        %221 = vmatprep.subr.mxu0 0.0
        %222 = vmatpush1.msra.mxu0 0.0
        %223 = vmatprep.subr.mxu0 0.0
        %224 = vmatpush1.msra.mxu0 0.0
        %225 = vmatprep.subr.mxu0 0.0
        %226 = vmatpush1.msra.mxu0 0.0
        %227 = vmatprep.subr.mxu0 0.0
        %228 = vmatpush1.msra.mxu0 0.0
        %229 = vmatprep.subr.mxu0 0.0
        %230 = vmatpush1.msra.mxu0 0.0
        %231 = vmatprep.subr.mxu0 0.0
        %232 = vmatpush1.msra.mxu0 0.0
        %233 = vmatprep.subr.mxu0 0.0
        %234 = vmatpush1.msra.mxu0 0.0
        %235 = vmatprep.subr.mxu0 0.0
        %236 = vmatpush1.msra.mxu0 0.0
        %237 = vmatprep.subr.mxu0 0.0
        %238 = vmatpush1.msra.mxu0 0.0
        %239 = vmatprep.subr.mxu0 0.0
        %240 = vmatpush1.msra.mxu0 0.0
        %241 = vmatprep.subr.mxu0 0.0
        %242 = vmatpush1.msra.mxu0 0.0
        %243 = vmatprep.subr.mxu0 0.0
        %244 = vmatpush1.msra.mxu0 0.0
        %245 = vmatprep.subr.mxu0 0.0
        %246 = vmatpush1.msra.mxu0 0.0
        %247 = vmatprep.subr.mxu0 0.0
        %248 = vmatpush1.msra.mxu0 0.0
        %249 = vmatprep.subr.mxu0 0.0
        %250 = vmatpush1.msra.mxu0 0.0
        %251 = vmatprep.subr.mxu0 0.0
        %252 = vmatpush1.msra.mxu0 0.0
        %253 = vmatprep.subr.mxu0 0.0
        %254 = vmatpush1.msra.mxu0 0.0
        %255 = vmatprep.subr.mxu0 0.0
        %256 = vmatpush1.msra.mxu0 0.0
        %257 = vmatprep.subr.mxu0 0.0
        %258 = vmatpush1.msra.mxu0 0.0
        %259 = vmatprep.subr.mxu0 0.0
        %260 = vmatpush1.msra.mxu0 0.0
        %261 = vmatprep.subr.mxu0 0.0
        %262 = vmatpush1.msra.mxu0 0.0
        %263 = vmatprep.subr.mxu0 0.0
        %264 = vmatpush1.msra.mxu0 0.0
        %265 = vmatprep.subr.mxu0 0.0
        %266 = vmatpush1.msra.mxu0 0.0
        %267 = vmatprep.subr.mxu0 0.0
        %268 = vmatpush1.msra.mxu0 0.0
        %269 = vmatprep.subr.mxu0 0.0
        %270 = vmatpush1.msra.mxu0 0.0
        %271 = vmatprep.subr.mxu0 0.0
        %272 = vmatpush1.msra.mxu0 0.0
        %273 = vmatprep.mubr.f32.mxu0 0.0
        %v274 = vand.u32 %v133, 4294901760
        %275 = vmatmul.mubr.f32.gmra.mrb[0].mxu0 %v274
        %v276 = vpop.f32.mrb[0].mxu0
        %v277 = vadd.f32 %v206, %v276
        %v278 = vpop.f32.mrb[0].mxu0
        %279 = vdwg.mxu0
        %280 = vmatprep.subr.mxu0 0.0
        %281 = vmatpush1.msra.mxu0 0.0
        %282 = vmatprep.subr.mxu0 0.0
        %283 = vmatpush1.msra.mxu0 0.0
        %284 = vmatprep.subr.mxu0 0.0
        %285 = vmatpush1.msra.mxu0 0.0
        %286 = vmatprep.subr.mxu0 0.0
        %287 = vmatpush1.msra.mxu0 0.0
        %288 = vmatprep.subr.mxu0 0.0
        %289 = vmatpush1.msra.mxu0 0.0
        %290 = vmatprep.subr.mxu0 0.0
        %291 = vmatpush1.msra.mxu0 0.0
        %292 = vmatprep.subr.mxu0 0.0
        %293 = vmatpush1.msra.mxu0 0.0
        %294 = vmatprep.subr.mxu0 0.0
        %295 = vmatpush1.msra.mxu0 0.0
        %296 = vmatprep.subr.mxu0 0.0
        %297 = vmatpush1.msra.mxu0 0.0
        %298 = vmatprep.subr.mxu0 0.0
        %299 = vmatpush1.msra.mxu0 0.0
        %300 = vmatprep.subr.mxu0 0.0
        %301 = vmatpush1.msra.mxu0 0.0
        %302 = vmatprep.subr.mxu0 0.0
        %303 = vmatpush1.msra.mxu0 0.0
        %304 = vmatprep.subr.mxu0 0.0
        %305 = vmatpush1.msra.mxu0 0.0
        %306 = vmatprep.subr.mxu0 0.0
        %307 = vmatpush1.msra.mxu0 0.0
        %308 = vmatprep.subr.mxu0 0.0
        %309 = vmatpush1.msra.mxu0 0.0
        %310 = vmatprep.subr.mxu0 0.0
        %311 = vmatpush1.msra.mxu0 0.0
        %312 = vmatprep.subr.mxu0 0.0
        %313 = vmatpush1.msra.mxu0 0.0
        %314 = vmatprep.subr.mxu0 0.0
        %315 = vmatpush1.msra.mxu0 0.0
        %316 = vmatprep.subr.mxu0 0.0
        %317 = vmatpush1.msra.mxu0 0.0
        %318 = vmatprep.subr.mxu0 0.0
        %319 = vmatpush1.msra.mxu0 0.0
        %320 = vmatprep.subr.mxu0 0.0
        %321 = vmatpush1.msra.mxu0 0.0
        %322 = vmatprep.subr.mxu0 0.0
        %323 = vmatpush1.msra.mxu0 0.0
        %324 = vmatprep.subr.mxu0 0.0
        %325 = vmatpush1.msra.mxu0 0.0
        %326 = vmatprep.subr.mxu0 0.0
        %327 = vmatpush1.msra.mxu0 0.0
        %328 = vmatprep.subr.mxu0 0.0
        %329 = vmatpush1.msra.mxu0 0.0
        %330 = vmatprep.subr.mxu0 0.0
        %331 = vmatpush1.msra.mxu0 0.0
        %332 = vmatprep.subr.mxu0 0.0
        %333 = vmatpush1.msra.mxu0 0.0
        %334 = vmatprep.subr.mxu0 0.0
        %335 = vmatpush1.msra.mxu0 0.0
        %336 = vmatprep.subr.mxu0 0.0
        %337 = vmatpush1.msra.mxu0 0.0
        %338 = vmatprep.subr.mxu0 0.0
        %339 = vmatpush1.msra.mxu0 0.0
        %340 = vmatprep.subr.mxu0 0.0
        %341 = vmatpush1.msra.mxu0 0.0
        %342 = vmatprep.subr.mxu0 0.0
        %343 = vmatpush1.msra.mxu0 0.0
        %344 = vmatprep.mubr.f32.mxu0 0.0
        %v345 = vand.u32 %v133, 4294901760
        %v346 = vsub.f32 %v133, %v345
        %347 = vmatmul.mubr.f32.gmra.mrb[0].mxu0 %v346
        %v348 = vpop.f32.mrb[0].mxu0
        %v349 = vadd.f32 %v277, %v348
        %v350 = vpop.f32.mrb[0].mxu0
        %351 = vdwg.mxu0
        %352 = vmatprep.subr.mxu0 0.0
        %353 = vmatpush1.msra.mxu0 1.0
        %354 = vmatprep.subr.mxu0 0.0
        %355 = vmatpush1.msra.mxu0 1.0
        %356 = vmatprep.subr.mxu0 0.0
        %357 = vmatpush1.msra.mxu0 1.0
        %358 = vmatprep.subr.mxu0 0.0
        %359 = vmatpush1.msra.mxu0 1.0
        %360 = vmatprep.subr.mxu0 0.0
        %361 = vmatpush1.msra.mxu0 1.0
        %362 = vmatprep.subr.mxu0 0.0
        %363 = vmatpush1.msra.mxu0 1.0
        %364 = vmatprep.subr.mxu0 0.0
        %365 = vmatpush1.msra.mxu0 1.0
        %366 = vmatprep.subr.mxu0 0.0
        %367 = vmatpush1.msra.mxu0 1.0
        %368 = vmatprep.subr.mxu0 0.0
        %369 = vmatpush1.msra.mxu0 1.0
        %370 = vmatprep.subr.mxu0 0.0
        %371 = vmatpush1.msra.mxu0 1.0
        %372 = vmatprep.subr.mxu0 0.0
        %373 = vmatpush1.msra.mxu0 1.0
        %374 = vmatprep.subr.mxu0 0.0
        %375 = vmatpush1.msra.mxu0 1.0
        %376 = vmatprep.subr.mxu0 0.0
        %377 = vmatpush1.msra.mxu0 1.0
        %378 = vmatprep.subr.mxu0 0.0
        %379 = vmatpush1.msra.mxu0 1.0
        %380 = vmatprep.subr.mxu0 0.0
        %381 = vmatpush1.msra.mxu0 1.0
        %382 = vmatprep.subr.mxu0 0.0
        %383 = vmatpush1.msra.mxu0 1.0
        %384 = vmatprep.subr.mxu0 0.0
        %385 = vmatpush1.msra.mxu0 0.0
        %386 = vmatprep.subr.mxu0 0.0
        %387 = vmatpush1.msra.mxu0 0.0
        %388 = vmatprep.subr.mxu0 0.0
        %389 = vmatpush1.msra.mxu0 0.0
        %390 = vmatprep.subr.mxu0 0.0
        %391 = vmatpush1.msra.mxu0 0.0
        %392 = vmatprep.subr.mxu0 0.0
        %393 = vmatpush1.msra.mxu0 0.0
        %394 = vmatprep.subr.mxu0 0.0
        %395 = vmatpush1.msra.mxu0 0.0
        %396 = vmatprep.subr.mxu0 0.0
        %397 = vmatpush1.msra.mxu0 0.0
        %398 = vmatprep.subr.mxu0 0.0
        %399 = vmatpush1.msra.mxu0 0.0
        %400 = vmatprep.subr.mxu0 0.0
        %401 = vmatpush1.msra.mxu0 0.0
        %402 = vmatprep.subr.mxu0 0.0
        %403 = vmatpush1.msra.mxu0 0.0
        %404 = vmatprep.subr.mxu0 0.0
        %405 = vmatpush1.msra.mxu0 0.0
        %406 = vmatprep.subr.mxu0 0.0
        %407 = vmatpush1.msra.mxu0 0.0
        %408 = vmatprep.subr.mxu0 0.0
        %409 = vmatpush1.msra.mxu0 0.0
        %410 = vmatprep.subr.mxu0 0.0
        %411 = vmatpush1.msra.mxu0 0.0
        %412 = vmatprep.subr.mxu0 0.0
        %413 = vmatpush1.msra.mxu0 0.0
        %414 = vmatprep.subr.mxu0 0.0
        %415 = vmatpush1.msra.mxu0 0.0
        %416 = vmatprep.mubr.f32.mxu0 0.0
        %v417 = vand.u32 %v133, 4294901760
        %v418 = vsub.f32 %v133, %v417
        %v419 = vand.u32 %v418, 4294901760
        %420 = vmatmul.mubr.f32.gmra.mrb[0].mxu0 %v419
        %v421 = vpop.f32.mrb[0].mxu0
        %v422 = vadd.f32 %v349, %v421
        %v423 = vpop.f32.mrb[0].mxu0
        %424 = vdwg.mxu0
        %425 = vmatprep.subr.mxu0 0.0
        %426 = vmatpush1.msra.mxu0 0.0
        %427 = vmatprep.subr.mxu0 0.0
        %428 = vmatpush1.msra.mxu0 0.0
        %429 = vmatprep.subr.mxu0 0.0
        %430 = vmatpush1.msra.mxu0 0.0
        %431 = vmatprep.subr.mxu0 0.0
        %432 = vmatpush1.msra.mxu0 0.0
        %433 = vmatprep.subr.mxu0 0.0
        %434 = vmatpush1.msra.mxu0 0.0
        %435 = vmatprep.subr.mxu0 0.0
        %436 = vmatpush1.msra.mxu0 0.0
        %437 = vmatprep.subr.mxu0 0.0
        %438 = vmatpush1.msra.mxu0 0.0
        %439 = vmatprep.subr.mxu0 0.0
        %440 = vmatpush1.msra.mxu0 0.0
        %441 = vmatprep.subr.mxu0 0.0
        %442 = vmatpush1.msra.mxu0 0.0
        %443 = vmatprep.subr.mxu0 0.0
        %444 = vmatpush1.msra.mxu0 0.0
        %445 = vmatprep.subr.mxu0 0.0
        %446 = vmatpush1.msra.mxu0 0.0
        %447 = vmatprep.subr.mxu0 0.0
        %448 = vmatpush1.msra.mxu0 0.0
        %449 = vmatprep.subr.mxu0 0.0
        %450 = vmatpush1.msra.mxu0 0.0
        %451 = vmatprep.subr.mxu0 0.0
        %452 = vmatpush1.msra.mxu0 0.0
        %453 = vmatprep.subr.mxu0 0.0
        %454 = vmatpush1.msra.mxu0 0.0
        %455 = vmatprep.subr.mxu0 0.0
        %456 = vmatpush1.msra.mxu0 0.0
        %457 = vmatprep.subr.mxu0 0.0
        %458 = vmatpush1.msra.mxu0 0.0
        %459 = vmatprep.subr.mxu0 0.0
        %460 = vmatpush1.msra.mxu0 0.0
        %461 = vmatprep.subr.mxu0 0.0
        %462 = vmatpush1.msra.mxu0 0.0
        %463 = vmatprep.subr.mxu0 0.0
        %464 = vmatpush1.msra.mxu0 0.0
        %465 = vmatprep.subr.mxu0 0.0
        %466 = vmatpush1.msra.mxu0 0.0
        %467 = vmatprep.subr.mxu0 0.0
        %468 = vmatpush1.msra.mxu0 0.0
        %469 = vmatprep.subr.mxu0 0.0
        %470 = vmatpush1.msra.mxu0 0.0
        %471 = vmatprep.subr.mxu0 0.0
        %472 = vmatpush1.msra.mxu0 0.0
        %473 = vmatprep.subr.mxu0 0.0
        %474 = vmatpush1.msra.mxu0 0.0
        %475 = vmatprep.subr.mxu0 0.0
        %476 = vmatpush1.msra.mxu0 0.0
        %477 = vmatprep.subr.mxu0 0.0
        %478 = vmatpush1.msra.mxu0 0.0
        %479 = vmatprep.subr.mxu0 0.0
        %480 = vmatpush1.msra.mxu0 0.0
        %481 = vmatprep.subr.mxu0 0.0
        %482 = vmatpush1.msra.mxu0 0.0
        %483 = vmatprep.subr.mxu0 0.0
        %484 = vmatpush1.msra.mxu0 0.0
        %485 = vmatprep.subr.mxu0 0.0
        %486 = vmatpush1.msra.mxu0 0.0
        %487 = vmatprep.subr.mxu0 0.0
        %488 = vmatpush1.msra.mxu0 0.0
        %489 = vmatprep.mubr.f32.mxu0 0.0
        %v490 = vand.u32 %v133, 4294901760
        %491 = vmatmul.mubr.f32.gmra.mrb[0].mxu0 %v490
        %v492 = vpop.f32.mrb[0].mxu0
        %v493 = vadd.f32 %v422, %v492
        %v494 = vpop.f32.mrb[0].mxu0
        %495 = vdwg.mxu0
        %496 = vmatprep.subr.mxu0 0.0
        %497 = vmatpush1.msra.mxu0 1.0
        %498 = vmatprep.subr.mxu0 0.0
        %499 = vmatpush1.msra.mxu0 1.0
        %500 = vmatprep.subr.mxu0 0.0
        %501 = vmatpush1.msra.mxu0 1.0
        %502 = vmatprep.subr.mxu0 0.0
        %503 = vmatpush1.msra.mxu0 1.0
        %504 = vmatprep.subr.mxu0 0.0
        %505 = vmatpush1.msra.mxu0 1.0
        %506 = vmatprep.subr.mxu0 0.0
        %507 = vmatpush1.msra.mxu0 1.0
        %508 = vmatprep.subr.mxu0 0.0
        %509 = vmatpush1.msra.mxu0 1.0
        %510 = vmatprep.subr.mxu0 0.0
        %511 = vmatpush1.msra.mxu0 1.0
        %512 = vmatprep.subr.mxu0 0.0
        %513 = vmatpush1.msra.mxu0 1.0
        %514 = vmatprep.subr.mxu0 0.0
        %515 = vmatpush1.msra.mxu0 1.0
        %516 = vmatprep.subr.mxu0 0.0
        %517 = vmatpush1.msra.mxu0 1.0
        %518 = vmatprep.subr.mxu0 0.0
        %519 = vmatpush1.msra.mxu0 1.0
        %520 = vmatprep.subr.mxu0 0.0
        %521 = vmatpush1.msra.mxu0 1.0
        %522 = vmatprep.subr.mxu0 0.0
        %523 = vmatpush1.msra.mxu0 1.0
        %524 = vmatprep.subr.mxu0 0.0
        %525 = vmatpush1.msra.mxu0 1.0
        %526 = vmatprep.subr.mxu0 0.0
        %527 = vmatpush1.msra.mxu0 1.0
        %528 = vmatprep.subr.mxu0 0.0
        %529 = vmatpush1.msra.mxu0 0.0
        %530 = vmatprep.subr.mxu0 0.0
        %531 = vmatpush1.msra.mxu0 0.0
        %532 = vmatprep.subr.mxu0 0.0
        %533 = vmatpush1.msra.mxu0 0.0
        %534 = vmatprep.subr.mxu0 0.0
        %535 = vmatpush1.msra.mxu0 0.0
        %536 = vmatprep.subr.mxu0 0.0
        %537 = vmatpush1.msra.mxu0 0.0
        %538 = vmatprep.subr.mxu0 0.0
        %539 = vmatpush1.msra.mxu0 0.0
        %540 = vmatprep.subr.mxu0 0.0
        %541 = vmatpush1.msra.mxu0 0.0
        %542 = vmatprep.subr.mxu0 0.0
        %543 = vmatpush1.msra.mxu0 0.0
        %544 = vmatprep.subr.mxu0 0.0
        %545 = vmatpush1.msra.mxu0 0.0
        %546 = vmatprep.subr.mxu0 0.0
        %547 = vmatpush1.msra.mxu0 0.0
        %548 = vmatprep.subr.mxu0 0.0
        %549 = vmatpush1.msra.mxu0 0.0
        %550 = vmatprep.subr.mxu0 0.0
        %551 = vmatpush1.msra.mxu0 0.0
        %552 = vmatprep.subr.mxu0 0.0
        %553 = vmatpush1.msra.mxu0 0.0
        %554 = vmatprep.subr.mxu0 0.0
        %555 = vmatpush1.msra.mxu0 0.0
        %556 = vmatprep.subr.mxu0 0.0
        %557 = vmatpush1.msra.mxu0 0.0
        %558 = vmatprep.subr.mxu0 0.0
        %559 = vmatpush1.msra.mxu0 0.0
        %560 = vmatprep.mubr.f32.mxu0 0.0
        %v561 = vand.u32 %v133, 4294901760
        %562 = vmatmul.mubr.f32.gmra.mrb[0].mxu0 %v561
        %v563 = vpop.f32.mrb[0].mxu0
        %v564 = vadd.f32 %v493, %v563
        %v565 = vpop.f32.mrb[0].mxu0
        %566 = vdwg.mxu0
        %v567 = vmax.f32 %v564, 1e-24
        %v568 = vrsqrt.pop %v567
        %v569 = vmul.f32 %v132, %v568
        %v570 = vmul.f32 %v569, 1.442695
        %v571 = vpow.pop %v570
        %572 = vmatprep.subr.mxu0 0.0
        %573 = vmatpush1.msra.mxu0 1.0
        %574 = vmatprep.subr.mxu0 0.0
        %575 = vmatpush1.msra.mxu0 1.0
        %576 = vmatprep.subr.mxu0 0.0
        %577 = vmatpush1.msra.mxu0 1.0
        %578 = vmatprep.subr.mxu0 0.0
        %579 = vmatpush1.msra.mxu0 1.0
        %580 = vmatprep.subr.mxu0 0.0
        %581 = vmatpush1.msra.mxu0 1.0
        %582 = vmatprep.subr.mxu0 0.0
        %583 = vmatpush1.msra.mxu0 1.0
        %584 = vmatprep.subr.mxu0 0.0
        %585 = vmatpush1.msra.mxu0 1.0
        %586 = vmatprep.subr.mxu0 0.0
        %587 = vmatpush1.msra.mxu0 1.0
        %588 = vmatprep.subr.mxu0 0.0
        %589 = vmatpush1.msra.mxu0 1.0
        %590 = vmatprep.subr.mxu0 0.0
        %591 = vmatpush1.msra.mxu0 1.0
        %592 = vmatprep.subr.mxu0 0.0
        %593 = vmatpush1.msra.mxu0 1.0
        %594 = vmatprep.subr.mxu0 0.0
        %595 = vmatpush1.msra.mxu0 1.0
        %596 = vmatprep.subr.mxu0 0.0
        %597 = vmatpush1.msra.mxu0 1.0
        %598 = vmatprep.subr.mxu0 0.0
        %599 = vmatpush1.msra.mxu0 1.0
        %600 = vmatprep.subr.mxu0 0.0
        %601 = vmatpush1.msra.mxu0 1.0
        %602 = vmatprep.subr.mxu0 0.0
        %603 = vmatpush1.msra.mxu0 1.0
        %604 = vmatprep.subr.mxu0 0.0
        %605 = vmatpush1.msra.mxu0 0.0
        %606 = vmatprep.subr.mxu0 0.0
        %607 = vmatpush1.msra.mxu0 0.0
        %608 = vmatprep.subr.mxu0 0.0
        %609 = vmatpush1.msra.mxu0 0.0
        %610 = vmatprep.subr.mxu0 0.0
        %611 = vmatpush1.msra.mxu0 0.0
        %612 = vmatprep.subr.mxu0 0.0
        %613 = vmatpush1.msra.mxu0 0.0
        %614 = vmatprep.subr.mxu0 0.0
        %615 = vmatpush1.msra.mxu0 0.0
        %616 = vmatprep.subr.mxu0 0.0
        %617 = vmatpush1.msra.mxu0 0.0
        %618 = vmatprep.subr.mxu0 0.0
        %619 = vmatpush1.msra.mxu0 0.0
        %620 = vmatprep.subr.mxu0 0.0
        %621 = vmatpush1.msra.mxu0 0.0
        %622 = vmatprep.subr.mxu0 0.0
        %623 = vmatpush1.msra.mxu0 0.0
        %624 = vmatprep.subr.mxu0 0.0
        %625 = vmatpush1.msra.mxu0 0.0
        %626 = vmatprep.subr.mxu0 0.0
        %627 = vmatpush1.msra.mxu0 0.0
        %628 = vmatprep.subr.mxu0 0.0
        %629 = vmatpush1.msra.mxu0 0.0
        %630 = vmatprep.subr.mxu0 0.0
        %631 = vmatpush1.msra.mxu0 0.0
        %632 = vmatprep.subr.mxu0 0.0
        %633 = vmatpush1.msra.mxu0 0.0
        %634 = vmatprep.subr.mxu0 0.0
        %635 = vmatpush1.msra.mxu0 0.0
        %636 = vmatprep.mubr.f32.mxu0 0.0
        %v637 = vand.u32 %v571, 4294901760
        %v638 = vsub.f32 %v571, %v637
        %v639 = vand.u32 %v638, 4294901760
        %v640 = vsub.f32 %v638, %v639
        %v641 = vand.u32 %v640, 4294901760
        %642 = vmatmul.mubr.f32.gmra.mrb[0].mxu0 %v641
        %v643 = vpop.f32.mrb[0].mxu0
        %v644 = vadd.f32 0.0, %v643
        %v645 = vpop.f32.mrb[0].mxu0
        %646 = vdwg.mxu0
        %647 = vmatprep.subr.mxu0 0.0
        %648 = vmatpush1.msra.mxu0 0.0
        %649 = vmatprep.subr.mxu0 0.0
        %650 = vmatpush1.msra.mxu0 0.0
        %651 = vmatprep.subr.mxu0 0.0
        %652 = vmatpush1.msra.mxu0 0.0
        %653 = vmatprep.subr.mxu0 0.0
        %654 = vmatpush1.msra.mxu0 0.0
        %655 = vmatprep.subr.mxu0 0.0
        %656 = vmatpush1.msra.mxu0 0.0
        %657 = vmatprep.subr.mxu0 0.0
        %658 = vmatpush1.msra.mxu0 0.0
        %659 = vmatprep.subr.mxu0 0.0
        %660 = vmatpush1.msra.mxu0 0.0
        %661 = vmatprep.subr.mxu0 0.0
        %662 = vmatpush1.msra.mxu0 0.0
        %663 = vmatprep.subr.mxu0 0.0
        %664 = vmatpush1.msra.mxu0 0.0
        %665 = vmatprep.subr.mxu0 0.0
        %666 = vmatpush1.msra.mxu0 0.0
        %667 = vmatprep.subr.mxu0 0.0
        %668 = vmatpush1.msra.mxu0 0.0
        %669 = vmatprep.subr.mxu0 0.0
        %670 = vmatpush1.msra.mxu0 0.0
        %671 = vmatprep.subr.mxu0 0.0
        %672 = vmatpush1.msra.mxu0 0.0
        %673 = vmatprep.subr.mxu0 0.0
        %674 = vmatpush1.msra.mxu0 0.0
        %675 = vmatprep.subr.mxu0 0.0
        %676 = vmatpush1.msra.mxu0 0.0
        %677 = vmatprep.subr.mxu0 0.0
        %678 = vmatpush1.msra.mxu0 0.0
        %679 = vmatprep.subr.mxu0 0.0
        %680 = vmatpush1.msra.mxu0 0.0
        %681 = vmatprep.subr.mxu0 0.0
        %682 = vmatpush1.msra.mxu0 0.0
        %683 = vmatprep.subr.mxu0 0.0
        %684 = vmatpush1.msra.mxu0 0.0
        %685 = vmatprep.subr.mxu0 0.0
        %686 = vmatpush1.msra.mxu0 0.0
        %687 = vmatprep.subr.mxu0 0.0
        %688 = vmatpush1.msra.mxu0 0.0
        %689 = vmatprep.subr.mxu0 0.0
        %690 = vmatpush1.msra.mxu0 0.0
        %691 = vmatprep.subr.mxu0 0.0
        %692 = vmatpush1.msra.mxu0 0.0
        %693 = vmatprep.subr.mxu0 0.0
        %694 = vmatpush1.msra.mxu0 0.0
        %695 = vmatprep.subr.mxu0 0.0
        %696 = vmatpush1.msra.mxu0 0.0
        %697 = vmatprep.subr.mxu0 0.0
        %698 = vmatpush1.msra.mxu0 0.0
        %699 = vmatprep.subr.mxu0 0.0
        %700 = vmatpush1.msra.mxu0 0.0
        %701 = vmatprep.subr.mxu0 0.0
        %702 = vmatpush1.msra.mxu0 0.0
        %703 = vmatprep.subr.mxu0 0.0
        %704 = vmatpush1.msra.mxu0 0.0
        %705 = vmatprep.subr.mxu0 0.0
        %706 = vmatpush1.msra.mxu0 0.0
        %707 = vmatprep.subr.mxu0 0.0
        %708 = vmatpush1.msra.mxu0 0.0
        %709 = vmatprep.subr.mxu0 0.0
        %710 = vmatpush1.msra.mxu0 0.0
        %711 = vmatprep.mubr.f32.mxu0 0.0
        %v712 = vand.u32 %v571, 4294901760
        %713 = vmatmul.mubr.f32.gmra.mrb[0].mxu0 %v712
        %v714 = vpop.f32.mrb[0].mxu0
        %v715 = vadd.f32 %v644, %v714
        %v716 = vpop.f32.mrb[0].mxu0
        %717 = vdwg.mxu0
        %718 = vmatprep.subr.mxu0 0.0
        %719 = vmatpush1.msra.mxu0 0.0
        %720 = vmatprep.subr.mxu0 0.0
        %721 = vmatpush1.msra.mxu0 0.0
        %722 = vmatprep.subr.mxu0 0.0
        %723 = vmatpush1.msra.mxu0 0.0
        %724 = vmatprep.subr.mxu0 0.0
        %725 = vmatpush1.msra.mxu0 0.0
        %726 = vmatprep.subr.mxu0 0.0
        %727 = vmatpush1.msra.mxu0 0.0
        %728 = vmatprep.subr.mxu0 0.0
        %729 = vmatpush1.msra.mxu0 0.0
        %730 = vmatprep.subr.mxu0 0.0
        %731 = vmatpush1.msra.mxu0 0.0
        %732 = vmatprep.subr.mxu0 0.0
        %733 = vmatpush1.msra.mxu0 0.0
        %734 = vmatprep.subr.mxu0 0.0
        %735 = vmatpush1.msra.mxu0 0.0
        %736 = vmatprep.subr.mxu0 0.0
        %737 = vmatpush1.msra.mxu0 0.0
        %738 = vmatprep.subr.mxu0 0.0
        %739 = vmatpush1.msra.mxu0 0.0
        %740 = vmatprep.subr.mxu0 0.0
        %741 = vmatpush1.msra.mxu0 0.0
        %742 = vmatprep.subr.mxu0 0.0
        %743 = vmatpush1.msra.mxu0 0.0
        %744 = vmatprep.subr.mxu0 0.0
        %745 = vmatpush1.msra.mxu0 0.0
        %746 = vmatprep.subr.mxu0 0.0
        %747 = vmatpush1.msra.mxu0 0.0
        %748 = vmatprep.subr.mxu0 0.0
        %749 = vmatpush1.msra.mxu0 0.0
        %750 = vmatprep.subr.mxu0 0.0
        %751 = vmatpush1.msra.mxu0 0.0
        %752 = vmatprep.subr.mxu0 0.0
        %753 = vmatpush1.msra.mxu0 0.0
        %754 = vmatprep.subr.mxu0 0.0
        %755 = vmatpush1.msra.mxu0 0.0
        %756 = vmatprep.subr.mxu0 0.0
        %757 = vmatpush1.msra.mxu0 0.0
        %758 = vmatprep.subr.mxu0 0.0
        %759 = vmatpush1.msra.mxu0 0.0
        %760 = vmatprep.subr.mxu0 0.0
        %761 = vmatpush1.msra.mxu0 0.0
        %762 = vmatprep.subr.mxu0 0.0
        %763 = vmatpush1.msra.mxu0 0.0
        %764 = vmatprep.subr.mxu0 0.0
        %765 = vmatpush1.msra.mxu0 0.0
        %766 = vmatprep.subr.mxu0 0.0
        %767 = vmatpush1.msra.mxu0 0.0
        %768 = vmatprep.subr.mxu0 0.0
        %769 = vmatpush1.msra.mxu0 0.0
        %770 = vmatprep.subr.mxu0 0.0
        %771 = vmatpush1.msra.mxu0 0.0
        %772 = vmatprep.subr.mxu0 0.0
        %773 = vmatpush1.msra.mxu0 0.0
        %774 = vmatprep.subr.mxu0 0.0
        %775 = vmatpush1.msra.mxu0 0.0
        %776 = vmatprep.subr.mxu0 0.0
        %777 = vmatpush1.msra.mxu0 0.0
        %778 = vmatprep.subr.mxu0 0.0
        %779 = vmatpush1.msra.mxu0 0.0
        %780 = vmatprep.subr.mxu0 0.0
        %781 = vmatpush1.msra.mxu0 0.0
        %782 = vmatprep.mubr.f32.mxu0 0.0
        %v783 = vand.u32 %v571, 4294901760
        %v784 = vsub.f32 %v571, %v783
        %785 = vmatmul.mubr.f32.gmra.mrb[0].mxu0 %v784
        %v786 = vpop.f32.mrb[0].mxu0
        %v787 = vadd.f32 %v715, %v786
        %v788 = vpop.f32.mrb[0].mxu0
        %789 = vdwg.mxu0
        %790 = vmatprep.subr.mxu0 0.0
        %791 = vmatpush1.msra.mxu0 1.0
        %792 = vmatprep.subr.mxu0 0.0
        %793 = vmatpush1.msra.mxu0 1.0
        %794 = vmatprep.subr.mxu0 0.0
        %795 = vmatpush1.msra.mxu0 1.0
        %796 = vmatprep.subr.mxu0 0.0
        %797 = vmatpush1.msra.mxu0 1.0
        %798 = vmatprep.subr.mxu0 0.0
        %799 = vmatpush1.msra.mxu0 1.0
        %800 = vmatprep.subr.mxu0 0.0
        %801 = vmatpush1.msra.mxu0 1.0
        %802 = vmatprep.subr.mxu0 0.0
        %803 = vmatpush1.msra.mxu0 1.0
        %804 = vmatprep.subr.mxu0 0.0
        %805 = vmatpush1.msra.mxu0 1.0
        %806 = vmatprep.subr.mxu0 0.0
        %807 = vmatpush1.msra.mxu0 1.0
        %808 = vmatprep.subr.mxu0 0.0
        %809 = vmatpush1.msra.mxu0 1.0
        %810 = vmatprep.subr.mxu0 0.0
        %811 = vmatpush1.msra.mxu0 1.0
        %812 = vmatprep.subr.mxu0 0.0
        %813 = vmatpush1.msra.mxu0 1.0
        %814 = vmatprep.subr.mxu0 0.0
        %815 = vmatpush1.msra.mxu0 1.0
        %816 = vmatprep.subr.mxu0 0.0
        %817 = vmatpush1.msra.mxu0 1.0
        %818 = vmatprep.subr.mxu0 0.0
        %819 = vmatpush1.msra.mxu0 1.0
        %820 = vmatprep.subr.mxu0 0.0
        %821 = vmatpush1.msra.mxu0 1.0
        %822 = vmatprep.subr.mxu0 0.0
        %823 = vmatpush1.msra.mxu0 0.0
        %824 = vmatprep.subr.mxu0 0.0
        %825 = vmatpush1.msra.mxu0 0.0
        %826 = vmatprep.subr.mxu0 0.0
        %827 = vmatpush1.msra.mxu0 0.0
        %828 = vmatprep.subr.mxu0 0.0
        %829 = vmatpush1.msra.mxu0 0.0
        %830 = vmatprep.subr.mxu0 0.0
        %831 = vmatpush1.msra.mxu0 0.0
        %832 = vmatprep.subr.mxu0 0.0
        %833 = vmatpush1.msra.mxu0 0.0
        %834 = vmatprep.subr.mxu0 0.0
        %835 = vmatpush1.msra.mxu0 0.0
        %836 = vmatprep.subr.mxu0 0.0
        %837 = vmatpush1.msra.mxu0 0.0
        %838 = vmatprep.subr.mxu0 0.0
        %839 = vmatpush1.msra.mxu0 0.0
        %840 = vmatprep.subr.mxu0 0.0
        %841 = vmatpush1.msra.mxu0 0.0
        %842 = vmatprep.subr.mxu0 0.0
        %843 = vmatpush1.msra.mxu0 0.0
        %844 = vmatprep.subr.mxu0 0.0
        %845 = vmatpush1.msra.mxu0 0.0
        %846 = vmatprep.subr.mxu0 0.0
        %847 = vmatpush1.msra.mxu0 0.0
        %848 = vmatprep.subr.mxu0 0.0
        %849 = vmatpush1.msra.mxu0 0.0
        %850 = vmatprep.subr.mxu0 0.0
        %851 = vmatpush1.msra.mxu0 0.0
        %852 = vmatprep.subr.mxu0 0.0
        %853 = vmatpush1.msra.mxu0 0.0
        %854 = vmatprep.mubr.f32.mxu0 0.0
        %v855 = vand.u32 %v571, 4294901760
        %v856 = vsub.f32 %v571, %v855
        %v857 = vand.u32 %v856, 4294901760
        %858 = vmatmul.mubr.f32.gmra.mrb[0].mxu0 %v857
        %v859 = vpop.f32.mrb[0].mxu0
        %v860 = vadd.f32 %v787, %v859
        %v861 = vpop.f32.mrb[0].mxu0
        %862 = vdwg.mxu0
        %863 = vmatprep.subr.mxu0 0.0
        %864 = vmatpush1.msra.mxu0 0.0
        %865 = vmatprep.subr.mxu0 0.0
        %866 = vmatpush1.msra.mxu0 0.0
        %867 = vmatprep.subr.mxu0 0.0
        %868 = vmatpush1.msra.mxu0 0.0
        %869 = vmatprep.subr.mxu0 0.0
        %870 = vmatpush1.msra.mxu0 0.0
        %871 = vmatprep.subr.mxu0 0.0
        %872 = vmatpush1.msra.mxu0 0.0
        %873 = vmatprep.subr.mxu0 0.0
        %874 = vmatpush1.msra.mxu0 0.0
        %875 = vmatprep.subr.mxu0 0.0
        %876 = vmatpush1.msra.mxu0 0.0
        %877 = vmatprep.subr.mxu0 0.0
        %878 = vmatpush1.msra.mxu0 0.0
        %879 = vmatprep.subr.mxu0 0.0
        %880 = vmatpush1.msra.mxu0 0.0
        %881 = vmatprep.subr.mxu0 0.0
        %882 = vmatpush1.msra.mxu0 0.0
        %883 = vmatprep.subr.mxu0 0.0
        %884 = vmatpush1.msra.mxu0 0.0
        %885 = vmatprep.subr.mxu0 0.0
        %886 = vmatpush1.msra.mxu0 0.0
        %887 = vmatprep.subr.mxu0 0.0
        %888 = vmatpush1.msra.mxu0 0.0
        %889 = vmatprep.subr.mxu0 0.0
        %890 = vmatpush1.msra.mxu0 0.0
        %891 = vmatprep.subr.mxu0 0.0
        %892 = vmatpush1.msra.mxu0 0.0
        %893 = vmatprep.subr.mxu0 0.0
        %894 = vmatpush1.msra.mxu0 0.0
        %895 = vmatprep.subr.mxu0 0.0
        %896 = vmatpush1.msra.mxu0 0.0
        %897 = vmatprep.subr.mxu0 0.0
        %898 = vmatpush1.msra.mxu0 0.0
        %899 = vmatprep.subr.mxu0 0.0
        %900 = vmatpush1.msra.mxu0 0.0
        %901 = vmatprep.subr.mxu0 0.0
        %902 = vmatpush1.msra.mxu0 0.0
        %903 = vmatprep.subr.mxu0 0.0
        %904 = vmatpush1.msra.mxu0 0.0
        %905 = vmatprep.subr.mxu0 0.0
        %906 = vmatpush1.msra.mxu0 0.0
        %907 = vmatprep.subr.mxu0 0.0
        %908 = vmatpush1.msra.mxu0 0.0
        %909 = vmatprep.subr.mxu0 0.0
        %910 = vmatpush1.msra.mxu0 0.0
        %911 = vmatprep.subr.mxu0 0.0
        %912 = vmatpush1.msra.mxu0 0.0
        %913 = vmatprep.subr.mxu0 0.0
        %914 = vmatpush1.msra.mxu0 0.0
        %915 = vmatprep.subr.mxu0 0.0
        %916 = vmatpush1.msra.mxu0 0.0
        %917 = vmatprep.subr.mxu0 0.0
        %918 = vmatpush1.msra.mxu0 0.0
        %919 = vmatprep.subr.mxu0 0.0
        %920 = vmatpush1.msra.mxu0 0.0
        %921 = vmatprep.subr.mxu0 0.0
        %922 = vmatpush1.msra.mxu0 0.0
        %923 = vmatprep.subr.mxu0 0.0
        %924 = vmatpush1.msra.mxu0 0.0
        %925 = vmatprep.subr.mxu0 0.0
        %926 = vmatpush1.msra.mxu0 0.0
        %927 = vmatprep.mubr.f32.mxu0 0.0
        %v928 = vand.u32 %v571, 4294901760
        %929 = vmatmul.mubr.f32.gmra.mrb[0].mxu0 %v928
        %v930 = vpop.f32.mrb[0].mxu0
        %v931 = vadd.f32 %v860, %v930
        %v932 = vpop.f32.mrb[0].mxu0
        %933 = vdwg.mxu0
        %934 = vmatprep.subr.mxu0 0.0
        %935 = vmatpush1.msra.mxu0 1.0
        %936 = vmatprep.subr.mxu0 0.0
        %937 = vmatpush1.msra.mxu0 1.0
        %938 = vmatprep.subr.mxu0 0.0
        %939 = vmatpush1.msra.mxu0 1.0
        %940 = vmatprep.subr.mxu0 0.0
        %941 = vmatpush1.msra.mxu0 1.0
        %942 = vmatprep.subr.mxu0 0.0
        %943 = vmatpush1.msra.mxu0 1.0
        %944 = vmatprep.subr.mxu0 0.0
        %945 = vmatpush1.msra.mxu0 1.0
        %946 = vmatprep.subr.mxu0 0.0
        %947 = vmatpush1.msra.mxu0 1.0
        %948 = vmatprep.subr.mxu0 0.0
        %949 = vmatpush1.msra.mxu0 1.0
        %950 = vmatprep.subr.mxu0 0.0
        %951 = vmatpush1.msra.mxu0 1.0
        %952 = vmatprep.subr.mxu0 0.0
        %953 = vmatpush1.msra.mxu0 1.0
        %954 = vmatprep.subr.mxu0 0.0
        %955 = vmatpush1.msra.mxu0 1.0
        %956 = vmatprep.subr.mxu0 0.0
        %957 = vmatpush1.msra.mxu0 1.0
        %958 = vmatprep.subr.mxu0 0.0
        %959 = vmatpush1.msra.mxu0 1.0
        %960 = vmatprep.subr.mxu0 0.0
        %961 = vmatpush1.msra.mxu0 1.0
        %962 = vmatprep.subr.mxu0 0.0
        %963 = vmatpush1.msra.mxu0 1.0
        %964 = vmatprep.subr.mxu0 0.0
        %965 = vmatpush1.msra.mxu0 1.0
        %966 = vmatprep.subr.mxu0 0.0
        %967 = vmatpush1.msra.mxu0 0.0
        %968 = vmatprep.subr.mxu0 0.0
        %969 = vmatpush1.msra.mxu0 0.0
        %970 = vmatprep.subr.mxu0 0.0
        %971 = vmatpush1.msra.mxu0 0.0
        %972 = vmatprep.subr.mxu0 0.0
        %973 = vmatpush1.msra.mxu0 0.0
        %974 = vmatprep.subr.mxu0 0.0
        %975 = vmatpush1.msra.mxu0 0.0
        %976 = vmatprep.subr.mxu0 0.0
        %977 = vmatpush1.msra.mxu0 0.0
        %978 = vmatprep.subr.mxu0 0.0
        %979 = vmatpush1.msra.mxu0 0.0
        %980 = vmatprep.subr.mxu0 0.0
        %981 = vmatpush1.msra.mxu0 0.0
        %982 = vmatprep.subr.mxu0 0.0
        %983 = vmatpush1.msra.mxu0 0.0
        %984 = vmatprep.subr.mxu0 0.0
        %985 = vmatpush1.msra.mxu0 0.0
        %986 = vmatprep.subr.mxu0 0.0
        %987 = vmatpush1.msra.mxu0 0.0
        %988 = vmatprep.subr.mxu0 0.0
        %989 = vmatpush1.msra.mxu0 0.0
        %990 = vmatprep.subr.mxu0 0.0
        %991 = vmatpush1.msra.mxu0 0.0
        %992 = vmatprep.subr.mxu0 0.0
        %993 = vmatpush1.msra.mxu0 0.0
        %994 = vmatprep.subr.mxu0 0.0
        %995 = vmatpush1.msra.mxu0 0.0
        %996 = vmatprep.subr.mxu0 0.0
        %997 = vmatpush1.msra.mxu0 0.0
        %998 = vmatprep.mubr.f32.mxu0 0.0
        %v999 = vand.u32 %v571, 4294901760
        %1000 = vmatmul.mubr.f32.gmra.mrb[0].mxu0 %v999
        %v1001 = vpop.f32.mrb[0].mxu0
        %v1002 = vadd.f32 %v931, %v1001
        %v1003 = vpop.f32.mrb[0].mxu0
        %1004 = vdwg.mxu0
        %v1005 = vrcp.pop %v1002
        %v1006 = vmul.f32 %v571, %v1005
        %1007 = vst [vmem:[%s131] sm:$0xff] %v1006
        %s1008 = sand.u32 %s52, 1
        %s1009 = scalar_lea.sflag [#allocation4], %s1008
        %s1010 = sand.u32 %s52, 1
        %s1011 = smul.addr %s1010, 8
        %s1012 = scalar_lea.vmem [#allocation5], %s1011
        // Predicated region
        $region29: #{tpu_custom_call.1} parent=23 // pred_check
          %p1013 = pneg %p62
        $region30: #{tpu_custom_call.1} parent=23 // pred_check_branch
          %1015 = sbr.rel (%p1013) target = $region32
        $region31: #{tpu_custom_call.1} parent=23 // pred_region
          %s1017 = ssub.s32 128, 128
          %1018 = vsyncadd %s1009, %s1017
          %s1019 = smul.addr %s18, 128
          %s1020 = scalar_lea.hbm %s1, %s1019
          %s1022 = sshll.u32 %s1012, 4
          %s1023 = int_to_ptr.vmem [resolvable:$true] %s1022
          %1025 = dma.vmem_to_hbm [thread:$0]  %s1023, 128, %s1020, %s1009
        $region32: #{tpu_custom_call.1} parent=23 // pred_fallthru
          _
      $region24: #{tpu_custom_call.1} parent=5 // pred_fallthru
        _
      %p1026 = scmp.le.s32.totalorder 2, %s13
      // Predicated region
      $region33: #{tpu_custom_call.1} parent=5 // pred_check
        %p1027 = pneg %p1026
      $region34: #{tpu_custom_call.1} parent=5 // pred_check_branch
        %1029 = sbr.rel (%p1027) target = $region36
      $region35: #{tpu_custom_call.1} parent=5 // pred_region
        %s1030 = ssub.s32 %s13, 2
        // Predicated region
        $region37: #{tpu_custom_call.1} parent=35 // pred_check
          %p1031 = pneg %p68
        $region38: #{tpu_custom_call.1} parent=35 // pred_check_branch
          %1033 = sbr.rel (%p1031) target = $region40
        $region39: #{tpu_custom_call.1} parent=35 // pred_region
          %s1034 = sand.u32 %s53, 1
          %s1035 = scalar_lea.sflag [#allocation4], %s1034
          %s1036 = sand.u32 %s53, 1
          %s1037 = smul.addr %s1036, 8
          %s1038 = scalar_lea.vmem [#allocation5], %s1037
          %1039 = dma.done %s1035, 128
        $region40: #{tpu_custom_call.1} parent=35 // pred_fallthru
          _
      $region36: #{tpu_custom_call.1} parent=5 // pred_fallthru
        _
    $region6: #{tpu_custom_call.1} parent=1 // loop_footer
      %s17 = sadd.s32 1, %s13
    $region7: #{tpu_custom_call.1} parent=1 // loop_footer_branch
      %12 = sbr.rel target = $region3
    $region8: #{tpu_custom_call.1} parent=1 // loop_exit
      _
    %1040 = vsyncpa [#allocation3], 1
    %s1041 = scalar_lea.sflag [#allocation3], 1
    %1042 = vsyncpa %s1041, 1
    %1043 = vsyncpa [#allocation4], 1
    %s1044 = scalar_lea.sflag [#allocation4], 1
    %1045 = vsyncpa %s1044, 1

</llo_original>
